<compile_context>
chip_gen: v7x
topology: tpu7x:2x2x1
jax: 0.10.0
libtpu: 0.0.40
codegen_flags: <defaults>
</compile_context>

<pallas_src>
import functools
import math

import jax
import jax.numpy as jnp
from jax.experimental import pallas as pl
from jax.experimental.pallas import tpu as pltpu


def _make_kernel(C, K, s, T, W):
    """Kernel for one (sample, row-tile) grid step.

    x_ref: (1, C, T*W*s)      dilated input rows, lane = th*(W*s) + w*s + j'
    w_ref: (K, C)             permuted 1x1-conv weight, row r = i*s*C + j*C + c
    b_ref: (K, 1)             permuted bias
    a_ref: (1,)               PReLU alpha (SMEM)
    o_ref: (1, C, T*s*W*s)    flat pixel-shuffled output rows
    """
    Ws = W * s
    P = T * Ws
    SWs = s * Ws

    def kernel(x_ref, w_ref, b_ref, a_ref, o_ref):
        # 1x1 conv as one big lane-dense matmul (contraction over C).
        y = jnp.dot(w_ref[...], x_ref[0], preferred_element_type=jnp.float32)
        y = y + b_ref[...]                                    # (K, P)
        alpha = a_ref[0]
        # Sub-pixel column index j' = lane % s (input was dilated along W).
        jmod = jax.lax.broadcasted_iota(jnp.int32, (C, P), 1) % s
        for i in range(s):
            # Select, per lane, the conv channel belonging to sub-pixel (i, j=lane%s).
            zi = y[i * s * C:(i * s + 1) * C, :]
            for j in range(1, s):
                yij = y[(i * s + j) * C:(i * s + j + 1) * C, :]
                zi = jnp.where(jmod == j, yij, zi)
            zi = jnp.where(zi > 0.0, zi, alpha * zi)          # PReLU epilogue
            # Place row-tile th, sub-row i: lane-dense (C, W*s) chunk stores.
            for th in range(T):
                dst = th * SWs + i * Ws
                o_ref[0, :, dst:dst + Ws] = zi[:, th * Ws:(th + 1) * Ws]

    return kernel


def _vmem_limit_bytes():
    try:
        cap = int(pltpu.get_tpu_info().vmem_capacity_bytes)
    except Exception:
        cap = 64 << 20          # conservative (v7x physical per-TC VMEM)
    return min((cap * 3) // 4, 100 << 20)


def _pick_row_tile(N, H, W, C, s, budget_bytes):
    """Pick T = rows of H per grid step (block last dims stay lane-legal)."""
    Ws = W * s
    in_row = C * Ws * 4                       # dilated-input bytes per row
    out_row = s * in_row                      # output bytes per row
    per_row = 2 * in_row + 4 * out_row        # dbl-buffered blocks + matmul temps
    max_rows = max(1, min(budget_bytes // per_row, H, 64))
    lane_quantum = 128 // math.gcd(128, Ws)   # smallest T with (T*Ws) % 128 == 0

    def valid(t):
        return t == H or (t * Ws) % 128 == 0

    def best_upto(limit):
        best = 0
        for t in range(1, min(limit, max_rows) + 1):
            if H % t == 0 and valid(t):
                best = t
        return best

    t = best_upto(H)
    if t == 0:
        if lane_quantum <= max_rows:
            t = (max_rows // lane_quantum) * lane_quantum     # cdiv grid, masked edge
        else:
            # TODO(synk): degenerate shapes (odd W*s + tiny budget) fall back to a
            # sub-128-lane block; correct but with masked stores.
            t = min(H, max_rows)
    # Keep >= 2 grid steps so both v7x TensorCores get work (no effect on v5e/v6e).
    if N * (-(-H // t)) < 2:
        t2 = best_upto(max(1, H // 2))
        if t2 == 0 and lane_quantum <= max(1, H // 2):
            t2 = lane_quantum
        if t2 > 0:
            t = t2
    return t


@functools.partial(jax.jit, static_argnames=("scale",))
def upsample_block(x, weight, bias, alpha, *, scale):
    """Equivalent of Conv2d(C, C*s^2, k=1) -> PixelShuffle(s) -> PReLU().

    x:      (N, C, H, W) float32
    weight: (K, C, 1, 1) float32, K = C * scale**2   (PyTorch Conv2d layout)
    bias:   (K,) float32
    alpha:  () float32  (single shared PReLU parameter)
    returns (N, C, H*scale, W*scale) float32
    """
    N, C, H, W = x.shape
    s = scale
    K = C * s * s
    assert weight.shape == (K, C, 1, 1)

    # --- cheap, input-sized wrapper prep (single XLA copy over the input) ---
    # Dilate along W: x_rep[..., w*s + j'] = x[..., w]; the matmul result then
    # lands element-aligned on the final pixel-shuffled lane positions.
    x_rep = jnp.repeat(x, s, axis=-1).reshape(N, C, H * W * s)
    # Permute conv rows so row r = i*(s*C) + j*C + c_out  <->  k = c_out*s^2 + i*s + j.
    w_perm = weight.reshape(C, s, s, C).transpose(1, 2, 0, 3).reshape(K, C)
    b_perm = bias.reshape(C, s, s).transpose(1, 2, 0).reshape(K, 1)
    a_arr = jnp.asarray(alpha, jnp.float32).reshape(1)

    vmem_limit = _vmem_limit_bytes()
    T = _pick_row_tile(N, H, W, C, s, max(8 << 20, vmem_limit // 3))
    Ws = W * s
    grid = (N, -(-H // T))

    kernel = _make_kernel(C, K, s, T, W)
    out_flat = pl.pallas_call(
        kernel,
        out_shape=jax.ShapeDtypeStruct((N, C, H * s * W * s), jnp.float32),
        grid_spec=pltpu.PrefetchScalarGridSpec(
            num_scalar_prefetch=0,
            grid=grid,
            in_specs=[
                pl.BlockSpec((1, C, T * Ws), lambda n, t: (n, 0, t)),      # dilated x
                pl.BlockSpec((K, C), lambda n, t: (0, 0)),                  # weight (resident)
                pl.BlockSpec((K, 1), lambda n, t: (0, 0)),                  # bias (resident)
                pl.BlockSpec(memory_space=pltpu.MemorySpace.SMEM),          # PReLU alpha
            ],
            out_specs=pl.BlockSpec((1, C, T * s * Ws), lambda n, t: (n, 0, t)),
        ),
        compiler_params=pltpu.CompilerParams(
            dimension_semantics=("parallel", "parallel"),
            vmem_limit_bytes=vmem_limit),
    )(x_rep, w_perm, b_perm, a_arr)

    # Free reshape: flat row layout (h, i, w, j) == (H*s, W*s) row-major.
    return out_flat.reshape(N, C, H * s, W * s)


def _reference(x, weight, bias, alpha, scale):
    """Pure-JAX reference mirroring the PyTorch forward."""
    N, C, H, W = x.shape
    K = C * scale * scale
    w = weight.reshape(K, C)
    y = jnp.einsum("nchw,kc->nkhw", x, w) + bias[None, :, None, None]
    y = y.reshape(N, C, scale, scale, H, W)
    y = jnp.transpose(y, (0, 1, 4, 2, 5, 3)).reshape(N, C, H * scale, W * scale)
    return jnp.where(y > 0, y, alpha * y)


if __name__ == "__main__":
    key = jax.random.PRNGKey(0)
    kx, kw, kb = jax.random.split(key, 3)

    # Small shapes: batch=2, channels=4, spatial=16x16, scale=2
    N, C, H, W = 2, 4, 16, 16
    scale = 2
    K = C * scale * scale

    x = jax.random.normal(kx, (N, C, H, W), dtype=jnp.float32)
    weight = jax.random.normal(kw, (K, C, 1, 1), dtype=jnp.float32) * 0.1
    bias = jax.random.normal(kb, (K,), dtype=jnp.float32) * 0.01
    alpha = jnp.float32(0.25)  # PyTorch nn.PReLU() default init

    out = jax.block_until_ready(upsample_block(x, weight, bias, alpha, scale=scale))

    ref = _reference(x, weight, bias, alpha, scale)
    assert out.shape == (N, C, H * scale, W * scale), out.shape
    assert jnp.allclose(out, ref, atol=1e-5, rtol=1e-5), float(
        jnp.max(jnp.abs(out - ref)))

    print("KERNEL_OK")
</pallas_src>

<mosaic_0001>
module attributes {stable_mosaic.version = 11 : i64} {
  func.func @kernel(%arg0: i32, %arg1: i32, %arg2: memref<1x4x512xf32, #tpu.memory_space<vmem>>, %arg3: memref<16x4xf32, #tpu.memory_space<vmem>>, %arg4: memref<16x1xf32, #tpu.memory_space<vmem>>, %arg5: memref<1xf32, #tpu.memory_space<smem>>, %arg6: memref<1x4x1024xf32, #tpu.memory_space<vmem>>) attributes {dimension_semantics = [#tpu.dimension_semantics<parallel>, #tpu.dimension_semantics<parallel>], iteration_bounds = array<i64: 2, 1>, scalar_prefetch = 0 : i64, scratch_operands = 0 : i64, tpu.core_type = #tpu.core_type<tc>, window_params = [{transform_indices = @transform_0, window_bounds = array<i64: 1, 4, 512>}, {pipeline_mode = #tpu.pipeline_mode<synchronous>, transform_indices = @transform_1, window_bounds = array<i64: 16, 4>}, {pipeline_mode = #tpu.pipeline_mode<synchronous>, transform_indices = @transform_2, window_bounds = array<i64: 16, 1>}, {transform_indices = @transform_3, window_bounds = array<i64: 1>}, {transform_indices = @transform_4, window_bounds = array<i64: 1, 4, 1024>}]} {
    %c0 = arith.constant 0 : index
    %c0_0 = arith.constant 0 : index
    %0 = vector.load %arg3[%c0, %c0_0] : memref<16x4xf32, #tpu.memory_space<vmem>>, vector<16x4xf32>
    %c0_1 = arith.constant 0 : index
    %c0_2 = arith.constant 0 : index
    %c0_3 = arith.constant 0 : index
    %1 = vector.load %arg2[%c0_1, %c0_2, %c0_3] : memref<1x4x512xf32, #tpu.memory_space<vmem>>, vector<1x4x512xf32>
    %2 = vector.shape_cast %1 : vector<1x4x512xf32> to vector<4x512xf32>
    %cst = arith.constant dense<0.000000e+00> : vector<16x512xf32>
    %3 = tpu.matmul %0, %2, %cst {dimension_numbers = #tpu.dot_dimension_numbers<[1], [0], [0], [1], [0, 0, 1, 1], [], []>} : vector<16x4xf32>, vector<4x512xf32>, vector<16x512xf32> -> vector<16x512xf32>
    %c0_4 = arith.constant 0 : index
    %c0_5 = arith.constant 0 : index
    %4 = vector.load %arg4[%c0_4, %c0_5] : memref<16x1xf32, #tpu.memory_space<vmem>>, vector<16x1xf32>
    %5 = vector.broadcast %4 : vector<16x1xf32> to vector<16x512xf32>
    %6 = arith.addf %3, %5 : vector<16x512xf32>
    %c0_6 = arith.constant 0 : index
    %7 = memref.load %arg5[%c0_6] : memref<1xf32, #tpu.memory_space<smem>>
    %8 = tpu.iota {dimensions = array<i32: 1>} : vector<4x512xi32>
    %c2_i32 = arith.constant 2 : i32
    %c0_i32 = arith.constant 0 : i32
    %9 = arith.cmpi eq, %c2_i32, %c0_i32 : i32
    %c1_i32 = arith.constant 1 : i32
    %10 = arith.select %9, %c1_i32, %c2_i32 : i32
    %11 = vector.broadcast %10 : i32 to vector<4x512xi32>
    %12 = arith.remsi %8, %11 : vector<4x512xi32>
    %c0_i32_7 = arith.constant 0 : i32
    %13 = vector.broadcast %c0_i32_7 : i32 to vector<4x512xi32>
    %14 = arith.cmpi ne, %12, %13 : vector<4x512xi32>
    %c0_i32_8 = arith.constant 0 : i32
    %15 = vector.broadcast %c0_i32_8 : i32 to vector<4x512xi32>
    %16 = arith.cmpi slt, %12, %15 : vector<4x512xi32>
    %c0_i32_9 = arith.constant 0 : i32
    %17 = arith.cmpi slt, %10, %c0_i32_9 : i32
    %18 = vector.broadcast %17 : i1 to vector<4x512xi1>
    %19 = vector.broadcast %18 : vector<4x512xi1> to vector<4x512xi1>
    %20 = arith.xori %16, %19 : vector<4x512xi1>
    %21 = arith.andi %20, %14 : vector<4x512xi1>
    %22 = vector.broadcast %10 : i32 to vector<4x512xi32>
    %23 = arith.addi %12, %22 : vector<4x512xi32>
    %24 = arith.select %21, %23, %12 : vector<4x512xi1>, vector<4x512xi32>
    %25 = vector.extract_strided_slice %6 {offsets = [0, 0], sizes = [4, 512], strides = [1, 1]} : vector<16x512xf32> to vector<4x512xf32>
    %26 = vector.extract_strided_slice %6 {offsets = [4, 0], sizes = [4, 512], strides = [1, 1]} : vector<16x512xf32> to vector<4x512xf32>
    %c1_i32_10 = arith.constant 1 : i32
    %27 = vector.broadcast %c1_i32_10 : i32 to vector<4x512xi32>
    %28 = arith.cmpi eq, %24, %27 : vector<4x512xi32>
    %29 = arith.select %28, %26, %25 : vector<4x512xi1>, vector<4x512xf32>
    %cst_11 = arith.constant 0.000000e+00 : f32
    %30 = vector.broadcast %cst_11 : f32 to vector<4x512xf32>
    %31 = arith.cmpf ogt, %29, %30 : vector<4x512xf32>
    %32 = vector.broadcast %7 : f32 to vector<4x512xf32>
    %33 = arith.mulf %32, %29 : vector<4x512xf32>
    %34 = arith.select %31, %29, %33 : vector<4x512xi1>, vector<4x512xf32>
    %35 = vector.extract_strided_slice %34 {offsets = [0, 0], sizes = [4, 32], strides = [1, 1]} : vector<4x512xf32> to vector<4x32xf32>
    %c0_12 = arith.constant 0 : index
    %c0_13 = arith.constant 0 : index
    %c0_14 = arith.constant 0 : index
    %36 = vector.load %arg6[%c0_12, %c0_13, %c0_14] : memref<1x4x1024xf32, #tpu.memory_space<vmem>>, vector<1x4x32xf32>
    %37 = vector.shape_cast %36 : vector<1x4x32xf32> to vector<4x32xf32>
    %38 = vector.shape_cast %35 : vector<4x32xf32> to vector<1x4x32xf32>
    tpu.vector_store %arg6[%c0_12, %c0_13, %c0_14], %38 {strides = array<i32>} : memref<1x4x1024xf32, #tpu.memory_space<vmem>>, vector<1x4x32xf32>,
    %39 = vector.extract_strided_slice %34 {offsets = [0, 32], sizes = [4, 32], strides = [1, 1]} : vector<4x512xf32> to vector<4x32xf32>
    %c0_15 = arith.constant 0 : index
    %c0_16 = arith.constant 0 : index
    %c64 = arith.constant 64 : index
    %40 = vector.load %arg6[%c0_15, %c0_16, %c64] : memref<1x4x1024xf32, #tpu.memory_space<vmem>>, vector<1x4x32xf32>
    %41 = vector.shape_cast %40 : vector<1x4x32xf32> to vector<4x32xf32>
    %42 = vector.shape_cast %39 : vector<4x32xf32> to vector<1x4x32xf32>
    tpu.vector_store %arg6[%c0_15, %c0_16, %c64], %42 {strides = array<i32>} : memref<1x4x1024xf32, #tpu.memory_space<vmem>>, vector<1x4x32xf32>,
    %43 = vector.extract_strided_slice %34 {offsets = [0, 64], sizes = [4, 32], strides = [1, 1]} : vector<4x512xf32> to vector<4x32xf32>
    %c0_17 = arith.constant 0 : index
    %c0_18 = arith.constant 0 : index
    %c128 = arith.constant 128 : index
    %44 = vector.load %arg6[%c0_17, %c0_18, %c128] : memref<1x4x1024xf32, #tpu.memory_space<vmem>>, vector<1x4x32xf32>
    %45 = vector.shape_cast %44 : vector<1x4x32xf32> to vector<4x32xf32>
    %46 = vector.shape_cast %43 : vector<4x32xf32> to vector<1x4x32xf32>
    tpu.vector_store %arg6[%c0_17, %c0_18, %c128], %46 {strides = array<i32>} : memref<1x4x1024xf32, #tpu.memory_space<vmem>>, vector<1x4x32xf32>,
    %47 = vector.extract_strided_slice %34 {offsets = [0, 96], sizes = [4, 32], strides = [1, 1]} : vector<4x512xf32> to vector<4x32xf32>
    %c0_19 = arith.constant 0 : index
    %c0_20 = arith.constant 0 : index
    %c192 = arith.constant 192 : index
    %48 = vector.load %arg6[%c0_19, %c0_20, %c192] : memref<1x4x1024xf32, #tpu.memory_space<vmem>>, vector<1x4x32xf32>
    %49 = vector.shape_cast %48 : vector<1x4x32xf32> to vector<4x32xf32>
    %50 = vector.shape_cast %47 : vector<4x32xf32> to vector<1x4x32xf32>
    tpu.vector_store %arg6[%c0_19, %c0_20, %c192], %50 {strides = array<i32>} : memref<1x4x1024xf32, #tpu.memory_space<vmem>>, vector<1x4x32xf32>,
    %51 = vector.extract_strided_slice %34 {offsets = [0, 128], sizes = [4, 32], strides = [1, 1]} : vector<4x512xf32> to vector<4x32xf32>
    %c0_21 = arith.constant 0 : index
    %c0_22 = arith.constant 0 : index
    %c256 = arith.constant 256 : index
    %52 = vector.load %arg6[%c0_21, %c0_22, %c256] : memref<1x4x1024xf32, #tpu.memory_space<vmem>>, vector<1x4x32xf32>
    %53 = vector.shape_cast %52 : vector<1x4x32xf32> to vector<4x32xf32>
    %54 = vector.shape_cast %51 : vector<4x32xf32> to vector<1x4x32xf32>
    tpu.vector_store %arg6[%c0_21, %c0_22, %c256], %54 {strides = array<i32>} : memref<1x4x1024xf32, #tpu.memory_space<vmem>>, vector<1x4x32xf32>,
    %55 = vector.extract_strided_slice %34 {offsets = [0, 160], sizes = [4, 32], strides = [1, 1]} : vector<4x512xf32> to vector<4x32xf32>
    %c0_23 = arith.constant 0 : index
    %c0_24 = arith.constant 0 : index
    %c320 = arith.constant 320 : index
    %56 = vector.load %arg6[%c0_23, %c0_24, %c320] : memref<1x4x1024xf32, #tpu.memory_space<vmem>>, vector<1x4x32xf32>
    %57 = vector.shape_cast %56 : vector<1x4x32xf32> to vector<4x32xf32>
    %58 = vector.shape_cast %55 : vector<4x32xf32> to vector<1x4x32xf32>
    tpu.vector_store %arg6[%c0_23, %c0_24, %c320], %58 {strides = array<i32>} : memref<1x4x1024xf32, #tpu.memory_space<vmem>>, vector<1x4x32xf32>,
    %59 = vector.extract_strided_slice %34 {offsets = [0, 192], sizes = [4, 32], strides = [1, 1]} : vector<4x512xf32> to vector<4x32xf32>
    %c0_25 = arith.constant 0 : index
    %c0_26 = arith.constant 0 : index
    %c384 = arith.constant 384 : index
    %60 = vector.load %arg6[%c0_25, %c0_26, %c384] : memref<1x4x1024xf32, #tpu.memory_space<vmem>>, vector<1x4x32xf32>
    %61 = vector.shape_cast %60 : vector<1x4x32xf32> to vector<4x32xf32>
    %62 = vector.shape_cast %59 : vector<4x32xf32> to vector<1x4x32xf32>
    tpu.vector_store %arg6[%c0_25, %c0_26, %c384], %62 {strides = array<i32>} : memref<1x4x1024xf32, #tpu.memory_space<vmem>>, vector<1x4x32xf32>,
    %63 = vector.extract_strided_slice %34 {offsets = [0, 224], sizes = [4, 32], strides = [1, 1]} : vector<4x512xf32> to vector<4x32xf32>
    %c0_27 = arith.constant 0 : index
    %c0_28 = arith.constant 0 : index
    %c448 = arith.constant 448 : index
    %64 = vector.load %arg6[%c0_27, %c0_28, %c448] : memref<1x4x1024xf32, #tpu.memory_space<vmem>>, vector<1x4x32xf32>
    %65 = vector.shape_cast %64 : vector<1x4x32xf32> to vector<4x32xf32>
    %66 = vector.shape_cast %63 : vector<4x32xf32> to vector<1x4x32xf32>
    tpu.vector_store %arg6[%c0_27, %c0_28, %c448], %66 {strides = array<i32>} : memref<1x4x1024xf32, #tpu.memory_space<vmem>>, vector<1x4x32xf32>,
    %67 = vector.extract_strided_slice %34 {offsets = [0, 256], sizes = [4, 32], strides = [1, 1]} : vector<4x512xf32> to vector<4x32xf32>
    %c0_29 = arith.constant 0 : index
    %c0_30 = arith.constant 0 : index
    %c512 = arith.constant 512 : index
    %68 = vector.load %arg6[%c0_29, %c0_30, %c512] : memref<1x4x1024xf32, #tpu.memory_space<vmem>>, vector<1x4x32xf32>
    %69 = vector.shape_cast %68 : vector<1x4x32xf32> to vector<4x32xf32>
    %70 = vector.shape_cast %67 : vector<4x32xf32> to vector<1x4x32xf32>
    tpu.vector_store %arg6[%c0_29, %c0_30, %c512], %70 {strides = array<i32>} : memref<1x4x1024xf32, #tpu.memory_space<vmem>>, vector<1x4x32xf32>,
    %71 = vector.extract_strided_slice %34 {offsets = [0, 288], sizes = [4, 32], strides = [1, 1]} : vector<4x512xf32> to vector<4x32xf32>
    %c0_31 = arith.constant 0 : index
    %c0_32 = arith.constant 0 : index
    %c576 = arith.constant 576 : index
    %72 = vector.load %arg6[%c0_31, %c0_32, %c576] : memref<1x4x1024xf32, #tpu.memory_space<vmem>>, vector<1x4x32xf32>
    %73 = vector.shape_cast %72 : vector<1x4x32xf32> to vector<4x32xf32>
    %74 = vector.shape_cast %71 : vector<4x32xf32> to vector<1x4x32xf32>
    tpu.vector_store %arg6[%c0_31, %c0_32, %c576], %74 {strides = array<i32>} : memref<1x4x1024xf32, #tpu.memory_space<vmem>>, vector<1x4x32xf32>,
    %75 = vector.extract_strided_slice %34 {offsets = [0, 320], sizes = [4, 32], strides = [1, 1]} : vector<4x512xf32> to vector<4x32xf32>
    %c0_33 = arith.constant 0 : index
    %c0_34 = arith.constant 0 : index
    %c640 = arith.constant 640 : index
    %76 = vector.load %arg6[%c0_33, %c0_34, %c640] : memref<1x4x1024xf32, #tpu.memory_space<vmem>>, vector<1x4x32xf32>
    %77 = vector.shape_cast %76 : vector<1x4x32xf32> to vector<4x32xf32>
    %78 = vector.shape_cast %75 : vector<4x32xf32> to vector<1x4x32xf32>
    tpu.vector_store %arg6[%c0_33, %c0_34, %c640], %78 {strides = array<i32>} : memref<1x4x1024xf32, #tpu.memory_space<vmem>>, vector<1x4x32xf32>,
    %79 = vector.extract_strided_slice %34 {offsets = [0, 352], sizes = [4, 32], strides = [1, 1]} : vector<4x512xf32> to vector<4x32xf32>
    %c0_35 = arith.constant 0 : index
    %c0_36 = arith.constant 0 : index
    %c704 = arith.constant 704 : index
    %80 = vector.load %arg6[%c0_35, %c0_36, %c704] : memref<1x4x1024xf32, #tpu.memory_space<vmem>>, vector<1x4x32xf32>
    %81 = vector.shape_cast %80 : vector<1x4x32xf32> to vector<4x32xf32>
    %82 = vector.shape_cast %79 : vector<4x32xf32> to vector<1x4x32xf32>
    tpu.vector_store %arg6[%c0_35, %c0_36, %c704], %82 {strides = array<i32>} : memref<1x4x1024xf32, #tpu.memory_space<vmem>>, vector<1x4x32xf32>,
    %83 = vector.extract_strided_slice %34 {offsets = [0, 384], sizes = [4, 32], strides = [1, 1]} : vector<4x512xf32> to vector<4x32xf32>
    %c0_37 = arith.constant 0 : index
    %c0_38 = arith.constant 0 : index
    %c768 = arith.constant 768 : index
    %84 = vector.load %arg6[%c0_37, %c0_38, %c768] : memref<1x4x1024xf32, #tpu.memory_space<vmem>>, vector<1x4x32xf32>
    %85 = vector.shape_cast %84 : vector<1x4x32xf32> to vector<4x32xf32>
    %86 = vector.shape_cast %83 : vector<4x32xf32> to vector<1x4x32xf32>
    tpu.vector_store %arg6[%c0_37, %c0_38, %c768], %86 {strides = array<i32>} : memref<1x4x1024xf32, #tpu.memory_space<vmem>>, vector<1x4x32xf32>,
    %87 = vector.extract_strided_slice %34 {offsets = [0, 416], sizes = [4, 32], strides = [1, 1]} : vector<4x512xf32> to vector<4x32xf32>
    %c0_39 = arith.constant 0 : index
    %c0_40 = arith.constant 0 : index
    %c832 = arith.constant 832 : index
    %88 = vector.load %arg6[%c0_39, %c0_40, %c832] : memref<1x4x1024xf32, #tpu.memory_space<vmem>>, vector<1x4x32xf32>
    %89 = vector.shape_cast %88 : vector<1x4x32xf32> to vector<4x32xf32>
    %90 = vector.shape_cast %87 : vector<4x32xf32> to vector<1x4x32xf32>
    tpu.vector_store %arg6[%c0_39, %c0_40, %c832], %90 {strides = array<i32>} : memref<1x4x1024xf32, #tpu.memory_space<vmem>>, vector<1x4x32xf32>,
    %91 = vector.extract_strided_slice %34 {offsets = [0, 448], sizes = [4, 32], strides = [1, 1]} : vector<4x512xf32> to vector<4x32xf32>
    %c0_41 = arith.constant 0 : index
    %c0_42 = arith.constant 0 : index
    %c896 = arith.constant 896 : index
    %92 = vector.load %arg6[%c0_41, %c0_42, %c896] : memref<1x4x1024xf32, #tpu.memory_space<vmem>>, vector<1x4x32xf32>
    %93 = vector.shape_cast %92 : vector<1x4x32xf32> to vector<4x32xf32>
    %94 = vector.shape_cast %91 : vector<4x32xf32> to vector<1x4x32xf32>
    tpu.vector_store %arg6[%c0_41, %c0_42, %c896], %94 {strides = array<i32>} : memref<1x4x1024xf32, #tpu.memory_space<vmem>>, vector<1x4x32xf32>,
    %95 = vector.extract_strided_slice %34 {offsets = [0, 480], sizes = [4, 32], strides = [1, 1]} : vector<4x512xf32> to vector<4x32xf32>
    %c0_43 = arith.constant 0 : index
    %c0_44 = arith.constant 0 : index
    %c960 = arith.constant 960 : index
    %96 = vector.load %arg6[%c0_43, %c0_44, %c960] : memref<1x4x1024xf32, #tpu.memory_space<vmem>>, vector<1x4x32xf32>
    %97 = vector.shape_cast %96 : vector<1x4x32xf32> to vector<4x32xf32>
    %98 = vector.shape_cast %95 : vector<4x32xf32> to vector<1x4x32xf32>
    tpu.vector_store %arg6[%c0_43, %c0_44, %c960], %98 {strides = array<i32>} : memref<1x4x1024xf32, #tpu.memory_space<vmem>>, vector<1x4x32xf32>,
    %99 = vector.extract_strided_slice %6 {offsets = [8, 0], sizes = [4, 512], strides = [1, 1]} : vector<16x512xf32> to vector<4x512xf32>
    %100 = vector.extract_strided_slice %6 {offsets = [12, 0], sizes = [4, 512], strides = [1, 1]} : vector<16x512xf32> to vector<4x512xf32>
    %c1_i32_45 = arith.constant 1 : i32
    %101 = vector.broadcast %c1_i32_45 : i32 to vector<4x512xi32>
    %102 = arith.cmpi eq, %24, %101 : vector<4x512xi32>
    %103 = arith.select %102, %100, %99 : vector<4x512xi1>, vector<4x512xf32>
    %cst_46 = arith.constant 0.000000e+00 : f32
    %104 = vector.broadcast %cst_46 : f32 to vector<4x512xf32>
    %105 = arith.cmpf ogt, %103, %104 : vector<4x512xf32>
    %106 = vector.broadcast %7 : f32 to vector<4x512xf32>
    %107 = arith.mulf %106, %103 : vector<4x512xf32>
    %108 = arith.select %105, %103, %107 : vector<4x512xi1>, vector<4x512xf32>
    %109 = vector.extract_strided_slice %108 {offsets = [0, 0], sizes = [4, 32], strides = [1, 1]} : vector<4x512xf32> to vector<4x32xf32>
    %c0_47 = arith.constant 0 : index
    %c0_48 = arith.constant 0 : index
    %c32 = arith.constant 32 : index
    %110 = vector.load %arg6[%c0_47, %c0_48, %c32] : memref<1x4x1024xf32, #tpu.memory_space<vmem>>, vector<1x4x32xf32>
    %111 = vector.shape_cast %110 : vector<1x4x32xf32> to vector<4x32xf32>
    %112 = vector.shape_cast %109 : vector<4x32xf32> to vector<1x4x32xf32>
    tpu.vector_store %arg6[%c0_47, %c0_48, %c32], %112 {strides = array<i32>} : memref<1x4x1024xf32, #tpu.memory_space<vmem>>, vector<1x4x32xf32>,
    %113 = vector.extract_strided_slice %108 {offsets = [0, 32], sizes = [4, 32], strides = [1, 1]} : vector<4x512xf32> to vector<4x32xf32>
    %c0_49 = arith.constant 0 : index
    %c0_50 = arith.constant 0 : index
    %c96 = arith.constant 96 : index
    %114 = vector.load %arg6[%c0_49, %c0_50, %c96] : memref<1x4x1024xf32, #tpu.memory_space<vmem>>, vector<1x4x32xf32>
    %115 = vector.shape_cast %114 : vector<1x4x32xf32> to vector<4x32xf32>
    %116 = vector.shape_cast %113 : vector<4x32xf32> to vector<1x4x32xf32>
    tpu.vector_store %arg6[%c0_49, %c0_50, %c96], %116 {strides = array<i32>} : memref<1x4x1024xf32, #tpu.memory_space<vmem>>, vector<1x4x32xf32>,
    %117 = vector.extract_strided_slice %108 {offsets = [0, 64], sizes = [4, 32], strides = [1, 1]} : vector<4x512xf32> to vector<4x32xf32>
    %c0_51 = arith.constant 0 : index
    %c0_52 = arith.constant 0 : index
    %c160 = arith.constant 160 : index
    %118 = vector.load %arg6[%c0_51, %c0_52, %c160] : memref<1x4x1024xf32, #tpu.memory_space<vmem>>, vector<1x4x32xf32>
    %119 = vector.shape_cast %118 : vector<1x4x32xf32> to vector<4x32xf32>
    %120 = vector.shape_cast %117 : vector<4x32xf32> to vector<1x4x32xf32>
    tpu.vector_store %arg6[%c0_51, %c0_52, %c160], %120 {strides = array<i32>} : memref<1x4x1024xf32, #tpu.memory_space<vmem>>, vector<1x4x32xf32>,
    %121 = vector.extract_strided_slice %108 {offsets = [0, 96], sizes = [4, 32], strides = [1, 1]} : vector<4x512xf32> to vector<4x32xf32>
    %c0_53 = arith.constant 0 : index
    %c0_54 = arith.constant 0 : index
    %c224 = arith.constant 224 : index
    %122 = vector.load %arg6[%c0_53, %c0_54, %c224] : memref<1x4x1024xf32, #tpu.memory_space<vmem>>, vector<1x4x32xf32>
    %123 = vector.shape_cast %122 : vector<1x4x32xf32> to vector<4x32xf32>
    %124 = vector.shape_cast %121 : vector<4x32xf32> to vector<1x4x32xf32>
    tpu.vector_store %arg6[%c0_53, %c0_54, %c224], %124 {strides = array<i32>} : memref<1x4x1024xf32, #tpu.memory_space<vmem>>, vector<1x4x32xf32>,
    %125 = vector.extract_strided_slice %108 {offsets = [0, 128], sizes = [4, 32], strides = [1, 1]} : vector<4x512xf32> to vector<4x32xf32>
    %c0_55 = arith.constant 0 : index
    %c0_56 = arith.constant 0 : index
    %c288 = arith.constant 288 : index
    %126 = vector.load %arg6[%c0_55, %c0_56, %c288] : memref<1x4x1024xf32, #tpu.memory_space<vmem>>, vector<1x4x32xf32>
    %127 = vector.shape_cast %126 : vector<1x4x32xf32> to vector<4x32xf32>
    %128 = vector.shape_cast %125 : vector<4x32xf32> to vector<1x4x32xf32>
    tpu.vector_store %arg6[%c0_55, %c0_56, %c288], %128 {strides = array<i32>} : memref<1x4x1024xf32, #tpu.memory_space<vmem>>, vector<1x4x32xf32>,
    %129 = vector.extract_strided_slice %108 {offsets = [0, 160], sizes = [4, 32], strides = [1, 1]} : vector<4x512xf32> to vector<4x32xf32>
    %c0_57 = arith.constant 0 : index
    %c0_58 = arith.constant 0 : index
    %c352 = arith.constant 352 : index
    %130 = vector.load %arg6[%c0_57, %c0_58, %c352] : memref<1x4x1024xf32, #tpu.memory_space<vmem>>, vector<1x4x32xf32>
    %131 = vector.shape_cast %130 : vector<1x4x32xf32> to vector<4x32xf32>
    %132 = vector.shape_cast %129 : vector<4x32xf32> to vector<1x4x32xf32>
    tpu.vector_store %arg6[%c0_57, %c0_58, %c352], %132 {strides = array<i32>} : memref<1x4x1024xf32, #tpu.memory_space<vmem>>, vector<1x4x32xf32>,
    %133 = vector.extract_strided_slice %108 {offsets = [0, 192], sizes = [4, 32], strides = [1, 1]} : vector<4x512xf32> to vector<4x32xf32>
    %c0_59 = arith.constant 0 : index
    %c0_60 = arith.constant 0 : index
    %c416 = arith.constant 416 : index
    %134 = vector.load %arg6[%c0_59, %c0_60, %c416] : memref<1x4x1024xf32, #tpu.memory_space<vmem>>, vector<1x4x32xf32>
    %135 = vector.shape_cast %134 : vector<1x4x32xf32> to vector<4x32xf32>
    %136 = vector.shape_cast %133 : vector<4x32xf32> to vector<1x4x32xf32>
    tpu.vector_store %arg6[%c0_59, %c0_60, %c416], %136 {strides = array<i32>} : memref<1x4x1024xf32, #tpu.memory_space<vmem>>, vector<1x4x32xf32>,
    %137 = vector.extract_strided_slice %108 {offsets = [0, 224], sizes = [4, 32], strides = [1, 1]} : vector<4x512xf32> to vector<4x32xf32>
    %c0_61 = arith.constant 0 : index
    %c0_62 = arith.constant 0 : index
    %c480 = arith.constant 480 : index
    %138 = vector.load %arg6[%c0_61, %c0_62, %c480] : memref<1x4x1024xf32, #tpu.memory_space<vmem>>, vector<1x4x32xf32>
    %139 = vector.shape_cast %138 : vector<1x4x32xf32> to vector<4x32xf32>
    %140 = vector.shape_cast %137 : vector<4x32xf32> to vector<1x4x32xf32>
    tpu.vector_store %arg6[%c0_61, %c0_62, %c480], %140 {strides = array<i32>} : memref<1x4x1024xf32, #tpu.memory_space<vmem>>, vector<1x4x32xf32>,
    %141 = vector.extract_strided_slice %108 {offsets = [0, 256], sizes = [4, 32], strides = [1, 1]} : vector<4x512xf32> to vector<4x32xf32>
    %c0_63 = arith.constant 0 : index
    %c0_64 = arith.constant 0 : index
    %c544 = arith.constant 544 : index
    %142 = vector.load %arg6[%c0_63, %c0_64, %c544] : memref<1x4x1024xf32, #tpu.memory_space<vmem>>, vector<1x4x32xf32>
    %143 = vector.shape_cast %142 : vector<1x4x32xf32> to vector<4x32xf32>
    %144 = vector.shape_cast %141 : vector<4x32xf32> to vector<1x4x32xf32>
    tpu.vector_store %arg6[%c0_63, %c0_64, %c544], %144 {strides = array<i32>} : memref<1x4x1024xf32, #tpu.memory_space<vmem>>, vector<1x4x32xf32>,
    %145 = vector.extract_strided_slice %108 {offsets = [0, 288], sizes = [4, 32], strides = [1, 1]} : vector<4x512xf32> to vector<4x32xf32>
    %c0_65 = arith.constant 0 : index
    %c0_66 = arith.constant 0 : index
    %c608 = arith.constant 608 : index
    %146 = vector.load %arg6[%c0_65, %c0_66, %c608] : memref<1x4x1024xf32, #tpu.memory_space<vmem>>, vector<1x4x32xf32>
    %147 = vector.shape_cast %146 : vector<1x4x32xf32> to vector<4x32xf32>
    %148 = vector.shape_cast %145 : vector<4x32xf32> to vector<1x4x32xf32>
    tpu.vector_store %arg6[%c0_65, %c0_66, %c608], %148 {strides = array<i32>} : memref<1x4x1024xf32, #tpu.memory_space<vmem>>, vector<1x4x32xf32>,
    %149 = vector.extract_strided_slice %108 {offsets = [0, 320], sizes = [4, 32], strides = [1, 1]} : vector<4x512xf32> to vector<4x32xf32>
    %c0_67 = arith.constant 0 : index
    %c0_68 = arith.constant 0 : index
    %c672 = arith.constant 672 : index
    %150 = vector.load %arg6[%c0_67, %c0_68, %c672] : memref<1x4x1024xf32, #tpu.memory_space<vmem>>, vector<1x4x32xf32>
    %151 = vector.shape_cast %150 : vector<1x4x32xf32> to vector<4x32xf32>
    %152 = vector.shape_cast %149 : vector<4x32xf32> to vector<1x4x32xf32>
    tpu.vector_store %arg6[%c0_67, %c0_68, %c672], %152 {strides = array<i32>} : memref<1x4x1024xf32, #tpu.memory_space<vmem>>, vector<1x4x32xf32>,
    %153 = vector.extract_strided_slice %108 {offsets = [0, 352], sizes = [4, 32], strides = [1, 1]} : vector<4x512xf32> to vector<4x32xf32>
    %c0_69 = arith.constant 0 : index
    %c0_70 = arith.constant 0 : index
    %c736 = arith.constant 736 : index
    %154 = vector.load %arg6[%c0_69, %c0_70, %c736] : memref<1x4x1024xf32, #tpu.memory_space<vmem>>, vector<1x4x32xf32>
    %155 = vector.shape_cast %154 : vector<1x4x32xf32> to vector<4x32xf32>
    %156 = vector.shape_cast %153 : vector<4x32xf32> to vector<1x4x32xf32>
    tpu.vector_store %arg6[%c0_69, %c0_70, %c736], %156 {strides = array<i32>} : memref<1x4x1024xf32, #tpu.memory_space<vmem>>, vector<1x4x32xf32>,
    %157 = vector.extract_strided_slice %108 {offsets = [0, 384], sizes = [4, 32], strides = [1, 1]} : vector<4x512xf32> to vector<4x32xf32>
    %c0_71 = arith.constant 0 : index
    %c0_72 = arith.constant 0 : index
    %c800 = arith.constant 800 : index
    %158 = vector.load %arg6[%c0_71, %c0_72, %c800] : memref<1x4x1024xf32, #tpu.memory_space<vmem>>, vector<1x4x32xf32>
    %159 = vector.shape_cast %158 : vector<1x4x32xf32> to vector<4x32xf32>
    %160 = vector.shape_cast %157 : vector<4x32xf32> to vector<1x4x32xf32>
    tpu.vector_store %arg6[%c0_71, %c0_72, %c800], %160 {strides = array<i32>} : memref<1x4x1024xf32, #tpu.memory_space<vmem>>, vector<1x4x32xf32>,
    %161 = vector.extract_strided_slice %108 {offsets = [0, 416], sizes = [4, 32], strides = [1, 1]} : vector<4x512xf32> to vector<4x32xf32>
    %c0_73 = arith.constant 0 : index
    %c0_74 = arith.constant 0 : index
    %c864 = arith.constant 864 : index
    %162 = vector.load %arg6[%c0_73, %c0_74, %c864] : memref<1x4x1024xf32, #tpu.memory_space<vmem>>, vector<1x4x32xf32>
    %163 = vector.shape_cast %162 : vector<1x4x32xf32> to vector<4x32xf32>
    %164 = vector.shape_cast %161 : vector<4x32xf32> to vector<1x4x32xf32>
    tpu.vector_store %arg6[%c0_73, %c0_74, %c864], %164 {strides = array<i32>} : memref<1x4x1024xf32, #tpu.memory_space<vmem>>, vector<1x4x32xf32>,
    %165 = vector.extract_strided_slice %108 {offsets = [0, 448], sizes = [4, 32], strides = [1, 1]} : vector<4x512xf32> to vector<4x32xf32>
    %c0_75 = arith.constant 0 : index
    %c0_76 = arith.constant 0 : index
    %c928 = arith.constant 928 : index
    %166 = vector.load %arg6[%c0_75, %c0_76, %c928] : memref<1x4x1024xf32, #tpu.memory_space<vmem>>, vector<1x4x32xf32>
    %167 = vector.shape_cast %166 : vector<1x4x32xf32> to vector<4x32xf32>
    %168 = vector.shape_cast %165 : vector<4x32xf32> to vector<1x4x32xf32>
    tpu.vector_store %arg6[%c0_75, %c0_76, %c928], %168 {strides = array<i32>} : memref<1x4x1024xf32, #tpu.memory_space<vmem>>, vector<1x4x32xf32>,
    %169 = vector.extract_strided_slice %108 {offsets = [0, 480], sizes = [4, 32], strides = [1, 1]} : vector<4x512xf32> to vector<4x32xf32>
    %c0_77 = arith.constant 0 : index
    %c0_78 = arith.constant 0 : index
    %c992 = arith.constant 992 : index
    %170 = vector.load %arg6[%c0_77, %c0_78, %c992] : memref<1x4x1024xf32, #tpu.memory_space<vmem>>, vector<1x4x32xf32>
    %171 = vector.shape_cast %170 : vector<1x4x32xf32> to vector<4x32xf32>
    %172 = vector.shape_cast %169 : vector<4x32xf32> to vector<1x4x32xf32>
    tpu.vector_store %arg6[%c0_77, %c0_78, %c992], %172 {strides = array<i32>} : memref<1x4x1024xf32, #tpu.memory_space<vmem>>, vector<1x4x32xf32>,
    return
  }
  func.func @transform_0(%arg0: i32, %arg1: i32) -> (i32, i32, i32) {
    %c0_i32 = arith.constant 0 : i32
    %c0_i32_0 = arith.constant 0 : i32
    return %arg0, %c0_i32, %arg1 : i32, i32, i32
  }
  func.func @transform_1(%arg0: i32, %arg1: i32) -> (i32, i32) {
    %c0_i32 = arith.constant 0 : i32
    %c0_i32_0 = arith.constant 0 : i32
    %c0_i32_1 = arith.constant 0 : i32
    return %c0_i32, %c0_i32_0 : i32, i32
  }
  func.func @transform_2(%arg0: i32, %arg1: i32) -> (i32, i32) {
    %c0_i32 = arith.constant 0 : i32
    %c0_i32_0 = arith.constant 0 : i32
    %c0_i32_1 = arith.constant 0 : i32
    return %c0_i32, %c0_i32_0 : i32, i32
  }
  func.func @transform_3(%arg0: i32, %arg1: i32) -> i32 {
    %c0_i32 = arith.constant 0 : i32
    %c0_i32_0 = arith.constant 0 : i32
    return %c0_i32 : i32
  }
  func.func @transform_4(%arg0: i32, %arg1: i32) -> (i32, i32, i32) {
    %c0_i32 = arith.constant 0 : i32
    %c0_i32_0 = arith.constant 0 : i32
    return %arg0, %c0_i32, %arg1 : i32, i32, i32
  }
}

</mosaic_0001>

<llo_original>
// kernel: upsample_block.1
$region0: #{upsample_block.1}
  #allocation0 [shape = 'u32[]', space=smem, size = 0x4, offset = 0x4, fixed_abs, tag = 'smem constant byte address 0x4 - core index']
  #allocation1 [shape = 'u32[144,128]{1,0:T(1,128)}', space=vmem, size = 0x12000, scoped, tag = 'internal scratch']
  #allocation2 [shape = 'f32[1]{0:T(128)S(6)}', space=smem, size = 0x200, scoped, tag = 'scoped memory for upsample_block.1']
  %s0 = inlined_call_operand.vmem [shape: f32[2,4,512], index: 0, kind: input, shape index: {}]
  %s1 = inlined_call_operand.vmem [shape: f32[16,4], index: 1, kind: input, shape index: {}]
  %s2 = inlined_call_operand.vmem [shape: f32[16,1], index: 2, kind: input, shape index: {}]
  %s3 = inlined_call_operand.<no memory space> [shape: f32[1], index: 3, kind: input, shape index: {}]
  %s4 = inlined_call_operand.vmem [shape: f32[2,4,1024], index: 4, kind: output, shape index: {}]
  %s5 = sld [smem:[#allocation0]]
  $region49: #{upsample_block.1} parent=0
    _
  %s7 = ssub.s32 1, %s5
  %s8 = scalar_select 0, %s7, %s5
  %9 = sst [smem:[#allocation2]] %s3
  loop: start=0, step=1, limit=4
  $region2: #{upsample_block.1} parent=0 // loop_pre_header
    _
  $region3: #{upsample_block.1} parent=0 // loop_header
    %s11 = sphi 0, %s15
    %p12 = scmp.ge.s32.totalorder %s11, 4
    %s18 = sphi 0, %s30
    %s19 = sphi 0, %s26
    %s20 = sphi 0, %s18
    %s21 = sphi 0, %s19
    %s22 = sphi 0, %s20
    %s23 = sphi 0, %s21
    %s35 = sphi 0, %s37
    %s38 = sphi 0, %s35
    %s39 = sphi 0, %s38
    %s55 = sphi 0, %s39
    %s59 = sphi 0, %s59
    %s61 = sphi 0, %s59
    %s62 = sphi 0, %s61
    %s76 = sphi 0, %s62
    %s80 = sphi 0, %s80
    %s82 = sphi 0, %s80
    %s83 = sphi 0, %s82
    %s97 = sphi 0, %s83
    %s101 = sphi 0, %s101
    %s103 = sphi 0, %s101
    %s104 = sphi 0, %s103
    %s118 = sphi 0, %s104
    %s126 = sphi 0, %s128
    %s129 = sphi 0, %s126
    %s130 = sphi 0, %s129
    %s146 = sphi 0, %s130
  $region4: #{upsample_block.1} parent=0 // loop_header_branch
    %14 = sbr.rel (%p12) target = $region8
  $region5: #{upsample_block.1} parent=0 // loop_body
    %s16 = ssub.s32 %s11, 1
    %s17 = ssub.s32 %s11, 2
    %s24 = sadd.s32 1, %s19
    %p25 = scmp.ge.s32.totalorder %s24, 1
    %s26 = scalar_select %p25, 0, %s24
    %s27 = sadd.s32 1, %s18
    %s28 = scalar_select %p25, %s27, %s18
    %p29 = scmp.ge.s32.totalorder %s28, 2
    %s30 = scalar_select %p29, 0, %s28
    %s31 = ssub.s32 %s18, %s30
    %s32 = ssub.s32 %s19, %s26
    %s33 = sor.u32 %s31, %s32
    %p34 = scmp.eq.s32.totalorder %s33, 0
    %s36 = sadd.s32 %s35, 1
    %s37 = scalar_select %p34, %s35, %s36
    %p40 = pneg %p34
    %p41 = scmp.eq.s32.totalorder %s11, 1
    %p42 = por %p40, %p41
    %p43 = scmp.ne.s32.totalorder %s35, %s38
    %p44 = scmp.eq.s32.totalorder %s11, 0
    %p45 = por %p43, %p44
    %p46 = scmp.ne.s32.totalorder %s35, %s38
    %p47 = scmp.eq.s32.totalorder %s16, 1
    %p48 = por %p46, %p47
    %p49 = scmp.ne.s32.totalorder %s38, %s39
    %p50 = scmp.eq.s32.totalorder %s16, 0
    %p51 = por %p49, %p50
    %p52 = scmp.ne.s32.totalorder %s38, %s39
    %p53 = scmp.eq.s32.totalorder %s17, 1
    %p54 = por %p52, %p53
    %p56 = scmp.ne.s32.totalorder %s39, %s55
    %p57 = scmp.eq.s32.totalorder %s17, 0
    %p58 = por %p56, %p57
    %s60 = sadd.s32 %s59, 1
    %p63 = scmp.eq.s32.totalorder %s11, 1
    %p64 = scmp.ne.s32.totalorder %s59, %s61
    %p65 = scmp.eq.s32.totalorder %s11, 0
    %p66 = por %p64, %p65
    %p67 = scmp.ne.s32.totalorder %s59, %s61
    %p68 = scmp.eq.s32.totalorder %s16, 1
    %p69 = por %p67, %p68
    %p70 = scmp.ne.s32.totalorder %s61, %s62
    %p71 = scmp.eq.s32.totalorder %s16, 0
    %p72 = por %p70, %p71
    %p73 = scmp.ne.s32.totalorder %s61, %s62
    %p74 = scmp.eq.s32.totalorder %s17, 1
    %p75 = por %p73, %p74
    %p77 = scmp.ne.s32.totalorder %s62, %s76
    %p78 = scmp.eq.s32.totalorder %s17, 0
    %p79 = por %p77, %p78
    %s81 = sadd.s32 %s80, 1
    %p84 = scmp.eq.s32.totalorder %s11, 1
    %p85 = scmp.ne.s32.totalorder %s80, %s82
    %p86 = scmp.eq.s32.totalorder %s11, 0
    %p87 = por %p85, %p86
    %p88 = scmp.ne.s32.totalorder %s80, %s82
    %p89 = scmp.eq.s32.totalorder %s16, 1
    %p90 = por %p88, %p89
    %p91 = scmp.ne.s32.totalorder %s82, %s83
    %p92 = scmp.eq.s32.totalorder %s16, 0
    %p93 = por %p91, %p92
    %p94 = scmp.ne.s32.totalorder %s82, %s83
    %p95 = scmp.eq.s32.totalorder %s17, 1
    %p96 = por %p94, %p95
    %p98 = scmp.ne.s32.totalorder %s83, %s97
    %p99 = scmp.eq.s32.totalorder %s17, 0
    %p100 = por %p98, %p99
    %s102 = sadd.s32 %s101, 1
    %p105 = scmp.eq.s32.totalorder %s11, 1
    %p106 = scmp.ne.s32.totalorder %s101, %s103
    %p107 = scmp.eq.s32.totalorder %s11, 0
    %p108 = por %p106, %p107
    %p109 = scmp.ne.s32.totalorder %s101, %s103
    %p110 = scmp.eq.s32.totalorder %s16, 1
    %p111 = por %p109, %p110
    %p112 = scmp.ne.s32.totalorder %s103, %s104
    %p113 = scmp.eq.s32.totalorder %s16, 0
    %p114 = por %p112, %p113
    %p115 = scmp.ne.s32.totalorder %s103, %s104
    %p116 = scmp.eq.s32.totalorder %s17, 1
    %p117 = por %p115, %p116
    %p119 = scmp.ne.s32.totalorder %s104, %s118
    %p120 = scmp.eq.s32.totalorder %s17, 0
    %p121 = por %p119, %p120
    %s122 = ssub.s32 %s18, %s30
    %s123 = ssub.s32 %s19, %s26
    %s124 = sor.u32 %s122, %s123
    %p125 = scmp.eq.s32.totalorder %s124, 0
    %s127 = sadd.s32 %s126, 1
    %s128 = scalar_select %p125, %s126, %s127
    %p131 = pneg %p125
    %p132 = scmp.eq.s32.totalorder %s11, 1
    %p133 = por %p131, %p132
    %p134 = scmp.ne.s32.totalorder %s126, %s129
    %p135 = scmp.eq.s32.totalorder %s11, 0
    %p136 = por %p134, %p135
    %p137 = scmp.ne.s32.totalorder %s126, %s129
    %p138 = scmp.eq.s32.totalorder %s16, 1
    %p139 = por %p137, %p138
    %p140 = scmp.ne.s32.totalorder %s129, %s130
    %p141 = scmp.eq.s32.totalorder %s16, 0
    %p142 = por %p140, %p141
    %p143 = scmp.ne.s32.totalorder %s129, %s130
    %p144 = scmp.eq.s32.totalorder %s17, 1
    %p145 = por %p143, %p144
    %p147 = scmp.ne.s32.totalorder %s130, %s146
    %p148 = scmp.eq.s32.totalorder %s17, 0
    %p149 = por %p147, %p148
    %p150 = scmp.le.s32.totalorder 1, %s11
    %p151 = scmp.lt.s32.totalorder %s11, 3
    %p152 = pnand %p150, %p151
    %p153 = pneg %p152
    // Predicated region
    $region9: #{upsample_block.1} parent=5 // pred_check
      _
    $region10: #{upsample_block.1} parent=5 // pred_check_branch
      %155 = sbr.rel (%p152) target = $region12
    $region11: #{upsample_block.1} parent=5 // pred_region
      %s156 = ssub.s32 %s11, 1
      // Predicated region
      $region13: #{upsample_block.1} parent=11 // pred_check
        %p157 = pneg %p72
      $region14: #{upsample_block.1} parent=11 // pred_check_branch
        %159 = sbr.rel (%p157) target = $region16
      $region15: #{upsample_block.1} parent=11 // pred_region
        _
      $region16: #{upsample_block.1} parent=11 // pred_fallthru
        _
      // Predicated region
      $region17: #{upsample_block.1} parent=11 // pred_check
        %p160 = pneg %p93
      $region18: #{upsample_block.1} parent=11 // pred_check_branch
        %162 = sbr.rel (%p160) target = $region20
      $region19: #{upsample_block.1} parent=11 // pred_region
        _
      $region20: #{upsample_block.1} parent=11 // pred_fallthru
        _
      // Predicated region
      $region21: #{upsample_block.1} parent=11 // pred_check
        %p163 = pneg %p114
      $region22: #{upsample_block.1} parent=11 // pred_check_branch
        %165 = sbr.rel (%p163) target = $region24
      $region23: #{upsample_block.1} parent=11 // pred_region
        _
      $region24: #{upsample_block.1} parent=11 // pred_fallthru
        _
    $region12: #{upsample_block.1} parent=5 // pred_fallthru
      _
    %p166 = scmp.lt.s32.totalorder %s11, 2
    // Predicated region
    $region25: #{upsample_block.1} parent=5 // pred_check
      %p167 = pneg %p166
    $region26: #{upsample_block.1} parent=5 // pred_check_branch
      %169 = sbr.rel (%p167) target = $region28
    $region27: #{upsample_block.1} parent=5 // pred_region
      // Predicated region
      $region29: #{upsample_block.1} parent=27 // pred_check
        %p170 = pneg %p45
      $region30: #{upsample_block.1} parent=27 // pred_check_branch
        %172 = sbr.rel (%p170) target = $region32
      $region31: #{upsample_block.1} parent=27 // pred_region
        %s173 = smul.u32 4, %s19
        %p174 = scmp.lt.s32.totalorder %s18, 1
        %s175 = scalar_select %p174, %s18, 1
        %p176 = scmp.lt.s32.totalorder %s173, 3
        %s177 = scalar_select %p176, %s173, 3
        %s178 = smul.addr %s175, 4
        %s179 = sadd.s32 %s177, %s178
        %s180 = smul.addr %s179, 4
        %s181 = scalar_lea.vmem %s0, %s180
        %s182 = smul.u32 4, %s19
      $region32: #{upsample_block.1} parent=27 // pred_fallthru
        _
    $region28: #{upsample_block.1} parent=5 // pred_fallthru
      _
    %p183 = scmp.le.s32.totalorder 1, %s11
    %p184 = scmp.lt.s32.totalorder %s11, 3
    %p185 = pnand %p183, %p184
    %p186 = pneg %p185
    // Predicated region
    $region33: #{upsample_block.1} parent=5 // pred_check
      _
    $region34: #{upsample_block.1} parent=5 // pred_check_branch
      %188 = sbr.rel (%p185) target = $region36
    $region35: #{upsample_block.1} parent=5 // pred_region
      %s189 = ssub.s32 %s11, 1
      %s190 = smul.u32 4, %s21
      %p191 = scmp.lt.s32.totalorder %s20, 1
      %s192 = scalar_select %p191, %s20, 1
      %p193 = scmp.lt.s32.totalorder %s190, 3
      %s194 = scalar_select %p193, %s190, 3
      %s195 = smul.addr %s192, 4
      %s196 = sadd.s32 %s194, %s195
      %s197 = smul.addr %s196, 4
      %s198 = scalar_lea.vmem %s0, %s197
      %p199 = pneg %p51
      %p200 = pneg %p48
      %p201 = pneg %p72
      %p202 = pneg %p69
      %p203 = pneg %p93
      %p204 = pneg %p90
      %p205 = pneg %p114
      %p206 = pneg %p111
      %p207 = pneg %p142
      %p208 = pneg %p139
      %s209 = smul.u32 8, %s21
      %p210 = scmp.lt.s32.totalorder %s20, 1
      %s211 = scalar_select %p210, %s20, 1
      %p212 = scmp.lt.s32.totalorder %s209, 7
      %s213 = scalar_select %p212, %s209, 7
      %s214 = smul.addr %s211, 8
      %s215 = sadd.s32 %s213, %s214
      %s216 = smul.addr %s215, 4
      %s217 = scalar_lea.vmem %s4, %s216
      %s218 = smul.u32 4, %s21
      %p219 = scmp.lt.s32.totalorder %s20, 1
      %s220 = scalar_select %p219, %s20, 1
      %p221 = scmp.lt.s32.totalorder %s218, 3
      %s222 = scalar_select %p221, %s218, 3
      %s223 = smul.addr %s220, 4
      %s224 = sadd.s32 %s222, %s223
      %s225 = smul.addr %s224, 4
      %s226 = scalar_lea.vmem %s0, %s225
      %s227 = smul.u32 4, %s21
      %s228 = smul.u32 8, %s21
      %p229 = scmp.lt.s32.totalorder %s20, 1
      %s230 = scalar_select %p229, %s20, 1
      %p231 = scmp.lt.s32.totalorder %s228, 7
      %s232 = scalar_select %p231, %s228, 7
      %s233 = smul.addr %s230, 8
      %s234 = sadd.s32 %s232, %s233
      %s235 = smul.addr %s234, 4
      %s236 = scalar_lea.vmem %s4, %s235
      %s237 = smul.u32 8, %s21
      %v238 = vld [vmem:[%s1] sm:$0xff]
      %v239 = vld [vmem:[%s1 + $0x8] sm:$0xff]
      %v240 = vld [vmem:[%s226] sm:$0xff]
      %v241 = vld [vmem:[%s226 + $0x8] sm:$0xff]
      %v242 = vld [vmem:[%s2] sm:$0xff]
      %v243 = vld [vmem:[%s2 + $0x8] sm:$0xff]
      %245 = vset.pattern.permute.xlu0 0
      %246 = vperm.xlu0 %245, %v242
      %v247 = vpop.permute.xlu0 %246
      %250 = vset.pattern.permute.xlu0 0
      %251 = vperm.xlu0 %250, %v243
      %v252 = vpop.permute.xlu0 %251
      %v256 = vcombine.high %v240, %v240
      %v257 = vcombine.high %v241, %v241
      %vm258 = vcmask 31744
      %v260 = vsel %vm258, %v238, 0
      %v263 = vsel %vm258, %v239, 0
      %vm265 = vcmask 1043456
      %v266 = vsel %vm265, %v240, 0
      %v268 = vsel %vm265, %v256, 0
      %v270 = vsel %vm265, %v241, 0
      %v272 = vsel %vm265, %v257, 0
      %274 = vmatprep.subr.mxu0 %v268
      %275 = vmatpush1.msra.mxu0 %v266
      %276 = vmatprep.subr.mxu0 0.0
      %277 = vmatpush1.msra.mxu0 0.0
      %278 = vmatprep.subr.mxu0 0.0
      %279 = vmatpush1.msra.mxu0 0.0
      %280 = vmatprep.subr.mxu0 0.0
      %281 = vmatpush1.msra.mxu0 0.0
      %282 = vmatprep.subr.mxu0 0.0
      %283 = vmatpush1.msra.mxu0 0.0
      %284 = vmatprep.subr.mxu0 0.0
      %285 = vmatpush1.msra.mxu0 0.0
      %286 = vmatprep.subr.mxu0 0.0
      %287 = vmatpush1.msra.mxu0 0.0
      %288 = vmatprep.subr.mxu0 0.0
      %289 = vmatpush1.msra.mxu0 0.0
      %290 = vmatprep.subr.mxu0 0.0
      %291 = vmatpush1.msra.mxu0 0.0
      %292 = vmatprep.subr.mxu0 0.0
      %293 = vmatpush1.msra.mxu0 0.0
      %294 = vmatprep.subr.mxu0 0.0
      %295 = vmatpush1.msra.mxu0 0.0
      %296 = vmatprep.subr.mxu0 0.0
      %297 = vmatpush1.msra.mxu0 0.0
      %298 = vmatprep.subr.mxu0 0.0
      %299 = vmatpush1.msra.mxu0 0.0
      %300 = vmatprep.subr.mxu0 0.0
      %301 = vmatpush1.msra.mxu0 0.0
      %302 = vmatprep.subr.mxu0 0.0
      %303 = vmatpush1.msra.mxu0 0.0
      %304 = vmatprep.subr.mxu0 0.0
      %305 = vmatpush1.msra.mxu0 0.0
      %306 = vmatprep.subr.mxu0 0.0
      %307 = vmatpush1.msra.mxu0 0.0
      %308 = vmatprep.subr.mxu0 0.0
      %309 = vmatpush1.msra.mxu0 0.0
      %310 = vmatprep.subr.mxu0 0.0
      %311 = vmatpush1.msra.mxu0 0.0
      %312 = vmatprep.subr.mxu0 0.0
      %313 = vmatpush1.msra.mxu0 0.0
      %314 = vmatprep.subr.mxu0 0.0
      %315 = vmatpush1.msra.mxu0 0.0
      %316 = vmatprep.subr.mxu0 0.0
      %317 = vmatpush1.msra.mxu0 0.0
      %318 = vmatprep.subr.mxu0 0.0
      %319 = vmatpush1.msra.mxu0 0.0
      %320 = vmatprep.subr.mxu0 0.0
      %321 = vmatpush1.msra.mxu0 0.0
      %322 = vmatprep.subr.mxu0 0.0
      %323 = vmatpush1.msra.mxu0 0.0
      %324 = vmatprep.subr.mxu0 0.0
      %325 = vmatpush1.msra.mxu0 0.0
      %326 = vmatprep.subr.mxu0 0.0
      %327 = vmatpush1.msra.mxu0 0.0
      %328 = vmatprep.subr.mxu0 0.0
      %329 = vmatpush1.msra.mxu0 0.0
      %330 = vmatprep.subr.mxu0 0.0
      %331 = vmatpush1.msra.mxu0 0.0
      %332 = vmatprep.subr.mxu0 0.0
      %333 = vmatpush1.msra.mxu0 0.0
      %334 = vmatprep.subr.mxu0 0.0
      %335 = vmatpush1.msra.mxu0 0.0
      %336 = vmatprep.subr.mxu0 0.0
      %337 = vmatpush1.msra.mxu0 0.0
      %338 = vmatprep.mubr.f32.mxu0 0.0
      %339 = vmatmul.mubr.f32.gmra.mrb[0].mxu0 %v260
      %v340 = vpop.f32.mrb[0].mxu0
      %v341 = vadd.f32 %v247, %v340
      %v342 = vpop.f32.mrb[0].mxu0
      %v343 = vadd.f32 %v247, %v342
      %344 = vmatprep.mubr.f32.mxu0 0.0
      %345 = vmatmul.mubr.f32.gmra.mrb[0].mxu0 %v263
      %v346 = vpop.f32.mrb[0].mxu0
      %v347 = vadd.f32 %v252, %v346
      %v348 = vpop.f32.mrb[0].mxu0
      %v349 = vadd.f32 %v252, %v348
      %350 = vdwg.mxu0
      %351 = vmatprep.subr.mxu0 %v272
      %352 = vmatpush1.msra.mxu0 %v270
      %353 = vmatprep.subr.mxu0 0.0
      %354 = vmatpush1.msra.mxu0 0.0
      %355 = vmatprep.subr.mxu0 0.0
      %356 = vmatpush1.msra.mxu0 0.0
      %357 = vmatprep.subr.mxu0 0.0
      %358 = vmatpush1.msra.mxu0 0.0
      %359 = vmatprep.subr.mxu0 0.0
      %360 = vmatpush1.msra.mxu0 0.0
      %361 = vmatprep.subr.mxu0 0.0
      %362 = vmatpush1.msra.mxu0 0.0
      %363 = vmatprep.subr.mxu0 0.0
      %364 = vmatpush1.msra.mxu0 0.0
      %365 = vmatprep.subr.mxu0 0.0
      %366 = vmatpush1.msra.mxu0 0.0
      %367 = vmatprep.subr.mxu0 0.0
      %368 = vmatpush1.msra.mxu0 0.0
      %369 = vmatprep.subr.mxu0 0.0
      %370 = vmatpush1.msra.mxu0 0.0
      %371 = vmatprep.subr.mxu0 0.0
      %372 = vmatpush1.msra.mxu0 0.0
      %373 = vmatprep.subr.mxu0 0.0
      %374 = vmatpush1.msra.mxu0 0.0
      %375 = vmatprep.subr.mxu0 0.0
      %376 = vmatpush1.msra.mxu0 0.0
      %377 = vmatprep.subr.mxu0 0.0
      %378 = vmatpush1.msra.mxu0 0.0
      %379 = vmatprep.subr.mxu0 0.0
      %380 = vmatpush1.msra.mxu0 0.0
      %381 = vmatprep.subr.mxu0 0.0
      %382 = vmatpush1.msra.mxu0 0.0
      %383 = vmatprep.subr.mxu0 0.0
      %384 = vmatpush1.msra.mxu0 0.0
      %385 = vmatprep.subr.mxu0 0.0
      %386 = vmatpush1.msra.mxu0 0.0
      %387 = vmatprep.subr.mxu0 0.0
      %388 = vmatpush1.msra.mxu0 0.0
      %389 = vmatprep.subr.mxu0 0.0
      %390 = vmatpush1.msra.mxu0 0.0
      %391 = vmatprep.subr.mxu0 0.0
      %392 = vmatpush1.msra.mxu0 0.0
      %393 = vmatprep.subr.mxu0 0.0
      %394 = vmatpush1.msra.mxu0 0.0
      %395 = vmatprep.subr.mxu0 0.0
      %396 = vmatpush1.msra.mxu0 0.0
      %397 = vmatprep.subr.mxu0 0.0
      %398 = vmatpush1.msra.mxu0 0.0
      %399 = vmatprep.subr.mxu0 0.0
      %400 = vmatpush1.msra.mxu0 0.0
      %401 = vmatprep.subr.mxu0 0.0
      %402 = vmatpush1.msra.mxu0 0.0
      %403 = vmatprep.subr.mxu0 0.0
      %404 = vmatpush1.msra.mxu0 0.0
      %405 = vmatprep.subr.mxu0 0.0
      %406 = vmatpush1.msra.mxu0 0.0
      %407 = vmatprep.subr.mxu0 0.0
      %408 = vmatpush1.msra.mxu0 0.0
      %409 = vmatprep.subr.mxu0 0.0
      %410 = vmatpush1.msra.mxu0 0.0
      %411 = vmatprep.subr.mxu0 0.0
      %412 = vmatpush1.msra.mxu0 0.0
      %413 = vmatprep.subr.mxu0 0.0
      %414 = vmatpush1.msra.mxu0 0.0
      %415 = vmatprep.mubr.f32.mxu0 0.0
      %416 = vmatmul.mubr.f32.gmra.mrb[0].mxu0 %v260
      %v417 = vpop.f32.mrb[0].mxu0
      %v418 = vadd.f32 %v247, %v417
      %v419 = vpop.f32.mrb[0].mxu0
      %v420 = vadd.f32 %v247, %v419
      %421 = vmatprep.mubr.f32.mxu0 0.0
      %422 = vmatmul.mubr.f32.gmra.mrb[0].mxu0 %v263
      %v423 = vpop.f32.mrb[0].mxu0
      %v424 = vadd.f32 %v252, %v423
      %v425 = vpop.f32.mrb[0].mxu0
      %v426 = vadd.f32 %v252, %v425
      %427 = vdwg.mxu0
      %s428 = sld [smem:[#allocation2]]
      %v429 = vlaneseq
      %v430 = vand.u32 %v429, 127
      %v431 = vadd.s32 %v430, 128
      %v432 = vadd.s32 %v430, 256
      %v433 = vadd.s32 %v430, 384
      %vm434 = vcmp.lt.s32.totalorder %v430, 0
      %v435 = vsub.s32 0, %v430
      %v436 = vsel %vm434, %v435, %v430
      %v437 = vshrl.u32 %v436, 1
      %v438 = vand.u32 %v436, 1
      %v439 = vsub.s32 0, %v438
      %v440 = vsel %vm434, %v439, %v438
      %vm441 = vcmp.lt.s32.totalorder %v431, 0
      %v442 = vsub.s32 0, %v431
      %v443 = vsel %vm441, %v442, %v431
      %v444 = vshrl.u32 %v443, 1
      %v445 = vand.u32 %v443, 1
      %v446 = vsub.s32 0, %v445
      %v447 = vsel %vm441, %v446, %v445
      %vm448 = vcmp.lt.s32.totalorder %v432, 0
      %v449 = vsub.s32 0, %v432
      %v450 = vsel %vm448, %v449, %v432
      %v451 = vshrl.u32 %v450, 1
      %v452 = vand.u32 %v450, 1
      %v453 = vsub.s32 0, %v452
      %v454 = vsel %vm448, %v453, %v452
      %vm455 = vcmp.lt.s32.totalorder %v433, 0
      %v456 = vsub.s32 0, %v433
      %v457 = vsel %vm455, %v456, %v433
      %v458 = vshrl.u32 %v457, 1
      %v459 = vand.u32 %v457, 1
      %v460 = vsub.s32 0, %v459
      %v461 = vsel %vm455, %v460, %v459
      %vm462 = vcmp.ne.s32.totalorder %v440, 0
      %vm463 = vcmp.ne.s32.totalorder %v447, 0
      %vm464 = vcmp.ne.s32.totalorder %v454, 0
      %vm465 = vcmp.ne.s32.totalorder %v461, 0
      %vm466 = vcmp.lt.s32.totalorder %v440, 0
      %vm467 = vcmp.lt.s32.totalorder %v447, 0
      %vm468 = vcmp.lt.s32.totalorder %v454, 0
      %vm469 = vcmp.lt.s32.totalorder %v461, 0
      %vm470 = vmand %vm466, %vm462
      %vm471 = vmand %vm467, %vm463
      %vm472 = vmand %vm468, %vm464
      %vm473 = vmand %vm469, %vm465
      %v474 = vadd.s32 %v440, 2
      %v475 = vadd.s32 %v447, 2
      %v476 = vadd.s32 %v454, 2
      %v477 = vadd.s32 %v461, 2
      %v478 = vsel %vm470, %v474, %v440
      %v479 = vsel %vm471, %v475, %v447
      %v480 = vsel %vm472, %v476, %v454
      %v481 = vsel %vm473, %v477, %v461
      %vm482 = vcmp.eq.s32.totalorder %v478, 1
      %vm483 = vcmp.eq.s32.totalorder %v479, 1
      %vm484 = vcmp.eq.s32.totalorder %v480, 1
      %vm485 = vcmp.eq.s32.totalorder %v481, 1
      %v490 = vrot.slane %v341, 4
      %v491 = vrot.slane %v343, 4
      %v492 = vrot.slane %v418, 4
      %v493 = vrot.slane %v420, 4
      %v498 = vsel %vm482, %v341, %v490
      %v499 = vsel %vm483, %v343, %v491
      %v500 = vsel %vm484, %v418, %v492
      %v501 = vsel %vm485, %v420, %v493
      %vm502 = vcmp.gt.f32.partialorder %v498, 0.0
      %vm503 = vcmp.gt.f32.partialorder %v499, 0.0
      %vm504 = vcmp.gt.f32.partialorder %v500, 0.0
      %vm505 = vcmp.gt.f32.partialorder %v501, 0.0
      %v506 = vstv %s428
      %v507 = vmul.f32 %v506, %v498
      %v508 = vmul.f32 %v506, %v499
      %v509 = vmul.f32 %v506, %v500
      %v510 = vmul.f32 %v506, %v501
      %v511 = vsel %vm502, %v498, %v507
      %v512 = vsel %vm503, %v499, %v508
      %v513 = vsel %vm504, %v500, %v509
      %v514 = vsel %vm505, %v501, %v510
      %v516 = vcombine.high %v511, %v511
      %vm518 = vcmask 257024
      %519 = vst.msk [vmem:[%s236] sm:$0xf] %vm518, %v516
      %520 = vrot.lane.b32.xlu0 %v516, 32
      %v521 = vpop.permute.xlu0 %520
      %vm523 = vcmask 781824
      %524 = vst.msk [vmem:[%s236] sm:$0xf] %vm523, %v521
      %525 = vrot.lane.b32.xlu0 %v516, 64
      %v526 = vpop.permute.xlu0 %525
      %528 = vst.msk [vmem:[%s236 + $0x4] sm:$0xf] %vm518, %v526
      %529 = vrot.lane.b32.xlu0 %v516, 96
      %v530 = vpop.permute.xlu0 %529
      %532 = vst.msk [vmem:[%s236 + $0x4] sm:$0xf] %vm523, %v530
      %v534 = vcombine.high %v512, %v512
      %536 = vst.msk [vmem:[%s236 + $0x8] sm:$0xf] %vm518, %v534
      %537 = vrot.lane.b32.xlu0 %v534, 32
      %v538 = vpop.permute.xlu0 %537
      %540 = vst.msk [vmem:[%s236 + $0x8] sm:$0xf] %vm523, %v538
      %541 = vrot.lane.b32.xlu0 %v534, 64
      %v542 = vpop.permute.xlu0 %541
      %544 = vst.msk [vmem:[%s236 + $0xc] sm:$0xf] %vm518, %v542
      %545 = vrot.lane.b32.xlu0 %v534, 96
      %v546 = vpop.permute.xlu0 %545
      %548 = vst.msk [vmem:[%s236 + $0xc] sm:$0xf] %vm523, %v546
      %v550 = vcombine.high %v513, %v513
      %552 = vst.msk [vmem:[%s236 + $0x10] sm:$0xf] %vm518, %v550
      %553 = vrot.lane.b32.xlu0 %v550, 32
      %v554 = vpop.permute.xlu0 %553
      %556 = vst.msk [vmem:[%s236 + $0x10] sm:$0xf] %vm523, %v554
      %557 = vrot.lane.b32.xlu0 %v550, 64
      %v558 = vpop.permute.xlu0 %557
      %560 = vst.msk [vmem:[%s236 + $0x14] sm:$0xf] %vm518, %v558
      %561 = vrot.lane.b32.xlu0 %v550, 96
      %v562 = vpop.permute.xlu0 %561
      %564 = vst.msk [vmem:[%s236 + $0x14] sm:$0xf] %vm523, %v562
      %v566 = vcombine.high %v514, %v514
      %568 = vst.msk [vmem:[%s236 + $0x18] sm:$0xf] %vm518, %v566
      %569 = vrot.lane.b32.xlu0 %v566, 32
      %v570 = vpop.permute.xlu0 %569
      %572 = vst.msk [vmem:[%s236 + $0x18] sm:$0xf] %vm523, %v570
      %573 = vrot.lane.b32.xlu0 %v566, 64
      %v574 = vpop.permute.xlu0 %573
      %576 = vst.msk [vmem:[%s236 + $0x1c] sm:$0xf] %vm518, %v574
      %577 = vrot.lane.b32.xlu0 %v566, 96
      %v578 = vpop.permute.xlu0 %577
      %580 = vst.msk [vmem:[%s236 + $0x1c] sm:$0xf] %vm523, %v578
      %v585 = vrot.slane %v347, 4
      %v586 = vrot.slane %v349, 4
      %v587 = vrot.slane %v424, 4
      %v588 = vrot.slane %v426, 4
      %v593 = vsel %vm482, %v347, %v585
      %v594 = vsel %vm483, %v349, %v586
      %v595 = vsel %vm484, %v424, %v587
      %v596 = vsel %vm485, %v426, %v588
      %vm597 = vcmp.gt.f32.partialorder %v593, 0.0
      %vm598 = vcmp.gt.f32.partialorder %v594, 0.0
      %vm599 = vcmp.gt.f32.partialorder %v595, 0.0
      %vm600 = vcmp.gt.f32.partialorder %v596, 0.0
      %v601 = vmul.f32 %v506, %v593
      %v602 = vmul.f32 %v506, %v594
      %v603 = vmul.f32 %v506, %v595
      %v604 = vmul.f32 %v506, %v596
      %v605 = vsel %vm597, %v593, %v601
      %v606 = vsel %vm598, %v594, %v602
      %v607 = vsel %vm599, %v595, %v603
      %v608 = vsel %vm600, %v596, %v604
      %v610 = vcombine.high %v605, %v605
      %611 = vrot.lane.b32.xlu0 %v610, 32
      %v612 = vpop.permute.xlu0 %611
      %vm614 = vcmask 519424
      %615 = vst.msk [vmem:[%s236] sm:$0xf] %vm614, %v612
      %616 = vrot.lane.b32.xlu0 %v610, 64
      %v617 = vpop.permute.xlu0 %616
      %vm619 = vcmask 1044224
      %620 = vst.msk [vmem:[%s236] sm:$0xf] %vm619, %v617
      %621 = vrot.lane.b32.xlu0 %v610, 96
      %v622 = vpop.permute.xlu0 %621
      %624 = vst.msk [vmem:[%s236 + $0x4] sm:$0xf] %vm614, %v622
      %626 = vst.msk [vmem:[%s236 + $0x4] sm:$0xf] %vm619, %v610
      %v628 = vcombine.high %v606, %v606
      %629 = vrot.lane.b32.xlu0 %v628, 32
      %v630 = vpop.permute.xlu0 %629
      %632 = vst.msk [vmem:[%s236 + $0x8] sm:$0xf] %vm614, %v630
      %633 = vrot.lane.b32.xlu0 %v628, 64
      %v634 = vpop.permute.xlu0 %633
      %636 = vst.msk [vmem:[%s236 + $0x8] sm:$0xf] %vm619, %v634
      %637 = vrot.lane.b32.xlu0 %v628, 96
      %v638 = vpop.permute.xlu0 %637
      %640 = vst.msk [vmem:[%s236 + $0xc] sm:$0xf] %vm614, %v638
      %642 = vst.msk [vmem:[%s236 + $0xc] sm:$0xf] %vm619, %v628
      %v644 = vcombine.high %v607, %v607
      %645 = vrot.lane.b32.xlu0 %v644, 32
      %v646 = vpop.permute.xlu0 %645
      %648 = vst.msk [vmem:[%s236 + $0x10] sm:$0xf] %vm614, %v646
      %649 = vrot.lane.b32.xlu0 %v644, 64
      %v650 = vpop.permute.xlu0 %649
      %652 = vst.msk [vmem:[%s236 + $0x10] sm:$0xf] %vm619, %v650
      %653 = vrot.lane.b32.xlu0 %v644, 96
      %v654 = vpop.permute.xlu0 %653
      %656 = vst.msk [vmem:[%s236 + $0x14] sm:$0xf] %vm614, %v654
      %658 = vst.msk [vmem:[%s236 + $0x14] sm:$0xf] %vm619, %v644
      %v660 = vcombine.high %v608, %v608
      %661 = vrot.lane.b32.xlu0 %v660, 32
      %v662 = vpop.permute.xlu0 %661
      %664 = vst.msk [vmem:[%s236 + $0x18] sm:$0xf] %vm614, %v662
      %665 = vrot.lane.b32.xlu0 %v660, 64
      %v666 = vpop.permute.xlu0 %665
      %668 = vst.msk [vmem:[%s236 + $0x18] sm:$0xf] %vm619, %v666
      %669 = vrot.lane.b32.xlu0 %v660, 96
      %v670 = vpop.permute.xlu0 %669
      %672 = vst.msk [vmem:[%s236 + $0x1c] sm:$0xf] %vm614, %v670
      %674 = vst.msk [vmem:[%s236 + $0x1c] sm:$0xf] %vm619, %v660
      %s675 = smul.u32 8, %s21
      %p676 = scmp.lt.s32.totalorder %s20, 1
      %s677 = scalar_select %p676, %s20, 1
      %p678 = scmp.lt.s32.totalorder %s675, 7
      %s679 = scalar_select %p678, %s675, 7
      %s680 = smul.addr %s677, 8
      %s681 = sadd.s32 %s679, %s680
      %s682 = smul.addr %s681, 4
      %s683 = scalar_lea.vmem %s4, %s682
      // Predicated region
      $region37: #{upsample_block.1} parent=35 // pred_check
        %p684 = pneg %p139
      $region38: #{upsample_block.1} parent=35 // pred_check_branch
        %686 = sbr.rel (%p684) target = $region40
      $region39: #{upsample_block.1} parent=35 // pred_region
        %s687 = smul.u32 8, %s21
      $region40: #{upsample_block.1} parent=35 // pred_fallthru
        _
    $region36: #{upsample_block.1} parent=5 // pred_fallthru
      _
    %p688 = scmp.le.s32.totalorder 2, %s11
    // Predicated region
    $region41: #{upsample_block.1} parent=5 // pred_check
      %p689 = pneg %p688
    $region42: #{upsample_block.1} parent=5 // pred_check_branch
      %691 = sbr.rel (%p689) target = $region44
    $region43: #{upsample_block.1} parent=5 // pred_region
      %s692 = ssub.s32 %s11, 2
      // Predicated region
      $region45: #{upsample_block.1} parent=43 // pred_check
        %p693 = pneg %p145
      $region46: #{upsample_block.1} parent=43 // pred_check_branch
        %695 = sbr.rel (%p693) target = $region48
      $region47: #{upsample_block.1} parent=43 // pred_region
        %s696 = smul.u32 8, %s23
        %p697 = scmp.lt.s32.totalorder %s22, 1
        %s698 = scalar_select %p697, %s22, 1
        %p699 = scmp.lt.s32.totalorder %s696, 7
        %s700 = scalar_select %p699, %s696, 7
        %s701 = smul.addr %s698, 8
        %s702 = sadd.s32 %s700, %s701
        %s703 = smul.addr %s702, 4
        %s704 = scalar_lea.vmem %s4, %s703
      $region48: #{upsample_block.1} parent=43 // pred_fallthru
        _
    $region44: #{upsample_block.1} parent=5 // pred_fallthru
      _
  $region6: #{upsample_block.1} parent=0 // loop_footer
    %s15 = sadd.s32 1, %s11
  $region7: #{upsample_block.1} parent=0 // loop_footer_branch
    %10 = sbr.rel target = $region3
  $region8: #{upsample_block.1} parent=0 // loop_exit
    _

</llo_original>
